<compile_context>
chip_gen: v5e
topology: v5e:2x2
jax: 0.10.0
libtpu: 0.0.40
codegen_flags: <defaults>
</compile_context>

<pallas_src>
import jax
import jax.numpy as jnp
import numpy as np
from jax.experimental import pallas as pl
from jax.experimental.pallas import tpu as pltpu

NEG_SLOPE = 0.1  # LeakyReLU(0.1)


def _leaky_relu(v):
    return jnp.where(v >= 0, v, NEG_SLOPE * v)


def feature_generation_kernel(j_ref, w2t_ref, w3t_ref, p_ref, out_ref):
    J = j_ref[...]                            # (N, N) f32, row = source, col = target
    N = J.shape[0]
    F = out_ref.shape[0]                      # feature_dim
    # p_ref: (2F, 6) packed column table of the six tiny parameter vectors.

    # ---- propagation weights (shared by conv1 / conv2 / conv3) ----------------------
    abs_J = jnp.abs(J)
    mask = (J != 0.0).astype(jnp.float32)
    cnt = jnp.sum(mask, axis=1, keepdims=True)                               # (N, 1)
    abs_sum = jnp.sum(abs_J, axis=1, keepdims=True)                          # (N, 1)
    abs_mean = jnp.where(cnt > 0, abs_sum / jnp.maximum(cnt, 1.0), 0.0)      # scatter_mean(|J|, row)

    # Diagonal of J (exact |diag| handling for the abs-degree).  Jtsl itself is never built.
    ri = jax.lax.broadcasted_iota(jnp.int32, (N, N), 0)
    ci = jax.lax.broadcasted_iota(jnp.int32, (N, N), 1)
    diagJ = jnp.sum(jnp.where(ri == ci, J, 0.0), axis=1, keepdims=True)      # (N, 1)

    # deg[i] = sum_j |Jtsl[i, j]|  with  Jtsl = J + diag(abs_mean)
    deg = abs_sum - jnp.abs(diagJ) + jnp.abs(diagJ + abs_mean)               # (N, 1)
    dinv = jnp.where(deg > 0, jax.lax.rsqrt(jnp.maximum(deg, 1e-30)), 0.0)   # (N, 1)

    # P = D^-1/2 Jtsl D^-1/2 ;  out = P^T @ x.  In transposed feature space:
    #   (P^T @ x)^T = dinv_t * (x^T @ Jsc0) + x^T * diag_add_t
    # with Jsc0 = J * dinv (row/source scaled, no diag) and the self-loop folded into a
    # (1, N) lane vector diag_add_t = (abs_mean * dinv^2)^T.
    Jsc0 = J * dinv                                                          # (N, N)
    dinv_t = jnp.transpose(dinv)                                             # (1, N)
    diag_add_t = jnp.transpose(abs_mean * dinv * dinv)                       # (1, N)

    def propagate_t(ht):
        # ht = x^T, shape (C, N): one standard MXU matmul + two lane-broadcast VPU ops.
        return dinv_t * jnp.dot(ht, Jsc0, preferred_element_type=jnp.float32) + ht * diag_add_t

    # ---- conv1: Ising_GCN(1, 1, use_W=False, use_bias=False), x_init = ones(N, 1) ---
    # (P^T @ 1)^T = dinv_t * colsum(Jsc0) + diag_add_t
    x1t = dinv_t * jnp.sum(Jsc0, axis=0, keepdims=True) + diag_add_t         # (1, N)

    # ---- packed small params ---------------------------------------------------------
    Pv = p_ref[...]                                                          # (2F, 6)
    w1t, b1t = Pv[0:F, 0:1], Pv[0:F, 1:2]                                    # linear.weight/bias
    b2lt, bias2t = Pv[:, 2:3], Pv[:, 3:4]                                    # conv2.lin.bias / conv2.bias
    b3lt, bias3t = Pv[0:F, 4:5], Pv[0:F, 5:6]                                # conv3.lin.bias / conv3.bias

    # ---- linear(1 -> F) + LeakyReLU (+ dropout = identity in eval mode) --------------
    h = _leaky_relu(w1t * x1t + b1t)                                         # (F, N)

    # ---- conv2: Linear(F, 2F) -> propagate -> + bias, LeakyReLU ----------------------
    h = jnp.dot(w2t_ref[...], h, preferred_element_type=jnp.float32) + b2lt  # (2F, N)
    h = _leaky_relu(propagate_t(h) + bias2t)

    # ---- conv3: Linear(2F, F) -> propagate -> + bias, LeakyReLU ----------------------
    h = jnp.dot(w3t_ref[...], h, preferred_element_type=jnp.float32) + b3lt  # (F, N)
    out_ref[...] = _leaky_relu(propagate_t(h) + bias3t)                      # (F, N)


def feature_generation(J, params):
    """J: dense (N, N) f32 coupling matrix. Returns (N, feature_dim) f32 features."""
    N = J.shape[0]
    F = params["w1"].shape[-1]

    # Transposed weights so in-kernel matmuls are standard (W^T) @ (x^T).
    w2t = jnp.transpose(params["w2"])                 # (2F, F)  == conv2.lin.weight
    w3t = jnp.transpose(params["w3"])                 # (F, 2F)  == conv3.lin.weight

    # Pack the six tiny per-channel vectors into one (2F, 6) column table.
    pvec = jnp.zeros((2 * F, 6), jnp.float32)
    pvec = pvec.at[:F, 0].set(params["w1"][0])        # linear.weight  (1 -> F)
    pvec = pvec.at[:F, 1].set(params["b1"][0])        # linear.bias
    pvec = pvec.at[:, 2].set(params["b2l"][0])        # conv2.lin.bias
    pvec = pvec.at[:, 3].set(params["bias2"][0])      # conv2.bias
    pvec = pvec.at[:F, 4].set(params["b3l"][0])       # conv3.lin.bias
    pvec = pvec.at[:F, 5].set(params["bias3"][0])     # conv3.bias

    vmem_bytes = int(min(64 * 1024 * 1024, max(16 * 1024 * 1024, 8 * N * N * 4 + 2 * 1024 * 1024)))
    out_t = pl.pallas_call(
        feature_generation_kernel,
        out_shape=jax.ShapeDtypeStruct((F, N), jnp.float32),
        in_specs=[pl.BlockSpec(memory_space=pltpu.MemorySpace.VMEM)] * 4,
        out_specs=pl.BlockSpec(memory_space=pltpu.MemorySpace.VMEM),
        compiler_params=pltpu.CompilerParams(vmem_limit_bytes=vmem_bytes),
    )(J, w2t, w3t, pvec)
    return jnp.transpose(out_t)                       # (N, F), node-major like the module


def reference_forward(J, params):
    """Pure-JAX reference with identical dense semantics (sanity check)."""
    N = J.shape[0]
    mask = (J != 0.0).astype(jnp.float32)
    cnt = mask.sum(1, keepdims=True)
    abs_mean = jnp.where(cnt > 0, jnp.abs(J).sum(1, keepdims=True) / jnp.maximum(cnt, 1.0), 0.0)
    Jtsl = J + jnp.eye(N, dtype=jnp.float32) * abs_mean
    deg = jnp.abs(Jtsl).sum(1, keepdims=True)
    dinv = jnp.where(deg > 0, 1.0 / jnp.sqrt(deg), 0.0)
    P = Jtsl * dinv * dinv.T
    PT = P.T
    leaky = lambda v: jnp.where(v >= 0, v, NEG_SLOPE * v)
    x = PT @ jnp.ones((N, 1), jnp.float32)                                   # conv1
    x = leaky(x @ params["w1"] + params["b1"])                               # linear + act
    x = leaky(PT @ (x @ params["w2"] + params["b2l"]) + params["bias2"])     # conv2 + act
    x = leaky(PT @ (x @ params["w3"] + params["b3l"]) + params["bias3"])     # conv3 + act
    return x


if __name__ == "__main__":
    key = jax.random.PRNGKey(0)
    N, F = 64, 8
    k = jax.random.split(key, 8)

    # Synthetic symmetric, zero-diagonal, sparse-ish Ising coupling matrix.
    dense = jax.random.normal(k[0], (N, N), jnp.float32)
    keep = (jax.random.uniform(k[1], (N, N)) < 0.3).astype(jnp.float32)
    J = 0.5 * (dense * keep + (dense * keep).T)
    ring = jnp.zeros((N, N), jnp.float32).at[jnp.arange(N), (jnp.arange(N) + 1) % N].set(0.5)
    J = (J + ring + ring.T) * (1.0 - jnp.eye(N, dtype=jnp.float32))

    # Deterministic parameter init (shapes from the module's __init__).
    params = {
        "w1":    0.5 * jax.random.normal(k[2], (1, F), jnp.float32),      # nn.Linear(1, F).weight^T
        "b1":    0.1 * jax.random.normal(k[3], (1, F), jnp.float32),      # nn.Linear(1, F).bias
        "w2":    0.5 * jax.random.normal(k[4], (F, 2 * F), jnp.float32),  # conv2.lin.weight^T
        "b2l":   0.1 * jax.random.normal(k[5], (1, 2 * F), jnp.float32),  # conv2.lin.bias
        "bias2": jnp.zeros((1, 2 * F), jnp.float32),                      # conv2.bias (zeroed in reset)
        "w3":    0.5 * jax.random.normal(k[6], (2 * F, F), jnp.float32),  # conv3.lin.weight^T
        "b3l":   0.1 * jax.random.normal(k[7], (1, F), jnp.float32),      # conv3.lin.bias
        "bias3": jnp.zeros((1, F), jnp.float32),                          # conv3.bias (zeroed in reset)
    }

    out = jax.block_until_ready(feature_generation(J, params))
    ref = jax.block_until_ready(reference_forward(J, params))
    assert out.shape == (N, F), out.shape
    np.testing.assert_allclose(np.asarray(out), np.asarray(ref), rtol=1e-4, atol=1e-4)
    print("KERNEL_OK")
</pallas_src>

<mosaic_0001>
module attributes {stable_mosaic.version = 11 : i64} {
  func.func @feature_generation_kernel(%arg0: memref<64x64xf32, #tpu.memory_space<vmem>>, %arg1: memref<16x8xf32, #tpu.memory_space<vmem>>, %arg2: memref<8x16xf32, #tpu.memory_space<vmem>>, %arg3: memref<16x6xf32, #tpu.memory_space<vmem>>, %arg4: memref<8x64xf32, #tpu.memory_space<vmem>>) attributes {dimension_semantics = [], scalar_prefetch = 0 : i64, scratch_operands = 0 : i64, tpu.core_type = #tpu.core_type<tc>} {
    %c0 = arith.constant 0 : index
    %c0_0 = arith.constant 0 : index
    %0 = vector.load %arg0[%c0, %c0_0] : memref<64x64xf32, #tpu.memory_space<vmem>>, vector<64x64xf32>
    %1 = math.absf %0 : vector<64x64xf32>
    %cst = arith.constant 0.000000e+00 : f32
    %2 = vector.broadcast %cst : f32 to vector<64x64xf32>
    %3 = arith.cmpf one, %0, %2 : vector<64x64xf32>
    %4 = arith.extui %3 : vector<64x64xi1> to vector<64x64xi32>
    %5 = arith.sitofp %4 : vector<64x64xi32> to vector<64x64xf32>
    %cst_1 = arith.constant dense<0.000000e+00> : vector<64xf32>
    %6 = vector.multi_reduction <add>, %5, %cst_1 [1] : vector<64x64xf32> to vector<64xf32>
    %7 = vector.shape_cast %6 : vector<64xf32> to vector<64x1xf32>
    %cst_2 = arith.constant dense<0.000000e+00> : vector<64xf32>
    %8 = vector.multi_reduction <add>, %1, %cst_2 [1] : vector<64x64xf32> to vector<64xf32>
    %9 = vector.shape_cast %8 : vector<64xf32> to vector<64x1xf32>
    %cst_3 = arith.constant 0.000000e+00 : f32
    %10 = vector.broadcast %cst_3 : f32 to vector<64x1xf32>
    %11 = arith.cmpf ogt, %7, %10 : vector<64x1xf32>
    %cst_4 = arith.constant 1.000000e+00 : f32
    %12 = vector.broadcast %cst_4 : f32 to vector<64x1xf32>
    %13 = arith.maximumf %7, %12 : vector<64x1xf32>
    %14 = arith.divf %9, %13 : vector<64x1xf32>
    %cst_5 = arith.constant 0.000000e+00 : f32
    %15 = vector.broadcast %cst_5 : f32 to vector<64x1xf32>
    %16 = arith.select %11, %14, %15 : vector<64x1xi1>, vector<64x1xf32>
    %17 = tpu.iota {dimensions = array<i32: 0>} : vector<64x64xi32>
    %18 = tpu.iota {dimensions = array<i32: 1>} : vector<64x64xi32>
    %19 = arith.cmpi eq, %17, %18 : vector<64x64xi32>
    %cst_6 = arith.constant 0.000000e+00 : f32
    %20 = vector.broadcast %cst_6 : f32 to vector<64x64xf32>
    %21 = arith.select %19, %0, %20 : vector<64x64xi1>, vector<64x64xf32>
    %cst_7 = arith.constant dense<0.000000e+00> : vector<64xf32>
    %22 = vector.multi_reduction <add>, %21, %cst_7 [1] : vector<64x64xf32> to vector<64xf32>
    %23 = vector.shape_cast %22 : vector<64xf32> to vector<64x1xf32>
    %24 = math.absf %23 : vector<64x1xf32>
    %25 = arith.subf %9, %24 : vector<64x1xf32>
    %26 = arith.addf %23, %16 : vector<64x1xf32>
    %27 = math.absf %26 : vector<64x1xf32>
    %28 = arith.addf %25, %27 : vector<64x1xf32>
    %cst_8 = arith.constant 0.000000e+00 : f32
    %29 = vector.broadcast %cst_8 : f32 to vector<64x1xf32>
    %30 = arith.cmpf ogt, %28, %29 : vector<64x1xf32>
    %cst_9 = arith.constant 1.000000e-30 : f32
    %31 = vector.broadcast %cst_9 : f32 to vector<64x1xf32>
    %32 = arith.maximumf %28, %31 : vector<64x1xf32>
    %33 = math.rsqrt %32 : vector<64x1xf32>
    %cst_10 = arith.constant 0.000000e+00 : f32
    %34 = vector.broadcast %cst_10 : f32 to vector<64x1xf32>
    %35 = arith.select %30, %33, %34 : vector<64x1xi1>, vector<64x1xf32>
    %36 = vector.broadcast %35 : vector<64x1xf32> to vector<64x64xf32>
    %37 = arith.mulf %0, %36 : vector<64x64xf32>
    %38 = tpu.transpose %35, [1, 0] : vector<64x1xf32> -> vector<1x64xf32>
    %39 = arith.mulf %16, %35 : vector<64x1xf32>
    %40 = arith.mulf %39, %35 : vector<64x1xf32>
    %41 = tpu.transpose %40, [1, 0] : vector<64x1xf32> -> vector<1x64xf32>
    %cst_11 = arith.constant dense<0.000000e+00> : vector<64xf32>
    %42 = vector.multi_reduction <add>, %37, %cst_11 [0] : vector<64x64xf32> to vector<64xf32>
    %43 = vector.shape_cast %42 : vector<64xf32> to vector<1x64xf32>
    %44 = arith.mulf %38, %43 : vector<1x64xf32>
    %45 = arith.addf %44, %41 : vector<1x64xf32>
    %c0_12 = arith.constant 0 : index
    %c0_13 = arith.constant 0 : index
    %46 = vector.load %arg3[%c0_12, %c0_13] : memref<16x6xf32, #tpu.memory_space<vmem>>, vector<16x6xf32>
    %47 = vector.extract_strided_slice %46 {offsets = [0, 0], sizes = [8, 1], strides = [1, 1]} : vector<16x6xf32> to vector<8x1xf32>
    %48 = vector.extract_strided_slice %46 {offsets = [0, 1], sizes = [8, 1], strides = [1, 1]} : vector<16x6xf32> to vector<8x1xf32>
    %49 = vector.extract_strided_slice %46 {offsets = [0, 2], sizes = [16, 1], strides = [1, 1]} : vector<16x6xf32> to vector<16x1xf32>
    %50 = vector.extract_strided_slice %46 {offsets = [0, 3], sizes = [16, 1], strides = [1, 1]} : vector<16x6xf32> to vector<16x1xf32>
    %51 = vector.extract_strided_slice %46 {offsets = [0, 4], sizes = [8, 1], strides = [1, 1]} : vector<16x6xf32> to vector<8x1xf32>
    %52 = vector.extract_strided_slice %46 {offsets = [0, 5], sizes = [8, 1], strides = [1, 1]} : vector<16x6xf32> to vector<8x1xf32>
    %53 = vector.broadcast %47 : vector<8x1xf32> to vector<8x64xf32>
    %54 = vector.broadcast %45 : vector<1x64xf32> to vector<8x64xf32>
    %55 = arith.mulf %53, %54 : vector<8x64xf32>
    %56 = vector.broadcast %48 : vector<8x1xf32> to vector<8x64xf32>
    %57 = arith.addf %55, %56 : vector<8x64xf32>
    %cst_14 = arith.constant 0.000000e+00 : f32
    %58 = vector.broadcast %cst_14 : f32 to vector<8x64xf32>
    %59 = arith.cmpf oge, %57, %58 : vector<8x64xf32>
    %cst_15 = arith.constant 1.000000e-01 : f32
    %60 = vector.broadcast %cst_15 : f32 to vector<8x64xf32>
    %61 = arith.mulf %60, %57 : vector<8x64xf32>
    %62 = arith.select %59, %57, %61 : vector<8x64xi1>, vector<8x64xf32>
    %c0_16 = arith.constant 0 : index
    %c0_17 = arith.constant 0 : index
    %63 = vector.load %arg1[%c0_16, %c0_17] : memref<16x8xf32, #tpu.memory_space<vmem>>, vector<16x8xf32>
    %cst_18 = arith.constant dense<0.000000e+00> : vector<16x64xf32>
    %64 = tpu.matmul %63, %62, %cst_18 {dimension_numbers = #tpu.dot_dimension_numbers<[1], [0], [0], [1], [0, 0, 1, 1], [], []>} : vector<16x8xf32>, vector<8x64xf32>, vector<16x64xf32> -> vector<16x64xf32>
    %65 = vector.broadcast %49 : vector<16x1xf32> to vector<16x64xf32>
    %66 = arith.addf %64, %65 : vector<16x64xf32>
    %cst_19 = arith.constant dense<0.000000e+00> : vector<16x64xf32>
    %67 = tpu.matmul %66, %37, %cst_19 {dimension_numbers = #tpu.dot_dimension_numbers<[1], [0], [0], [1], [0, 0, 1, 1], [], []>} : vector<16x64xf32>, vector<64x64xf32>, vector<16x64xf32> -> vector<16x64xf32>
    %68 = vector.broadcast %38 : vector<1x64xf32> to vector<16x64xf32>
    %69 = arith.mulf %68, %67 : vector<16x64xf32>
    %70 = vector.broadcast %41 : vector<1x64xf32> to vector<16x64xf32>
    %71 = arith.mulf %66, %70 : vector<16x64xf32>
    %72 = arith.addf %69, %71 : vector<16x64xf32>
    %73 = vector.broadcast %50 : vector<16x1xf32> to vector<16x64xf32>
    %74 = arith.addf %72, %73 : vector<16x64xf32>
    %cst_20 = arith.constant 0.000000e+00 : f32
    %75 = vector.broadcast %cst_20 : f32 to vector<16x64xf32>
    %76 = arith.cmpf oge, %74, %75 : vector<16x64xf32>
    %cst_21 = arith.constant 1.000000e-01 : f32
    %77 = vector.broadcast %cst_21 : f32 to vector<16x64xf32>
    %78 = arith.mulf %77, %74 : vector<16x64xf32>
    %79 = arith.select %76, %74, %78 : vector<16x64xi1>, vector<16x64xf32>
    %c0_22 = arith.constant 0 : index
    %c0_23 = arith.constant 0 : index
    %80 = vector.load %arg2[%c0_22, %c0_23] : memref<8x16xf32, #tpu.memory_space<vmem>>, vector<8x16xf32>
    %cst_24 = arith.constant dense<0.000000e+00> : vector<8x64xf32>
    %81 = tpu.matmul %80, %79, %cst_24 {dimension_numbers = #tpu.dot_dimension_numbers<[1], [0], [0], [1], [0, 0, 1, 1], [], []>} : vector<8x16xf32>, vector<16x64xf32>, vector<8x64xf32> -> vector<8x64xf32>
    %82 = vector.broadcast %51 : vector<8x1xf32> to vector<8x64xf32>
    %83 = arith.addf %81, %82 : vector<8x64xf32>
    %cst_25 = arith.constant dense<0.000000e+00> : vector<8x64xf32>
    %84 = tpu.matmul %83, %37, %cst_25 {dimension_numbers = #tpu.dot_dimension_numbers<[1], [0], [0], [1], [0, 0, 1, 1], [], []>} : vector<8x64xf32>, vector<64x64xf32>, vector<8x64xf32> -> vector<8x64xf32>
    %85 = vector.broadcast %38 : vector<1x64xf32> to vector<8x64xf32>
    %86 = arith.mulf %85, %84 : vector<8x64xf32>
    %87 = vector.broadcast %41 : vector<1x64xf32> to vector<8x64xf32>
    %88 = arith.mulf %83, %87 : vector<8x64xf32>
    %89 = arith.addf %86, %88 : vector<8x64xf32>
    %90 = vector.broadcast %52 : vector<8x1xf32> to vector<8x64xf32>
    %91 = arith.addf %89, %90 : vector<8x64xf32>
    %cst_26 = arith.constant 0.000000e+00 : f32
    %92 = vector.broadcast %cst_26 : f32 to vector<8x64xf32>
    %93 = arith.cmpf oge, %91, %92 : vector<8x64xf32>
    %cst_27 = arith.constant 1.000000e-01 : f32
    %94 = vector.broadcast %cst_27 : f32 to vector<8x64xf32>
    %95 = arith.mulf %94, %91 : vector<8x64xf32>
    %96 = arith.select %93, %91, %95 : vector<8x64xi1>, vector<8x64xf32>
    %c0_28 = arith.constant 0 : index
    %c0_29 = arith.constant 0 : index
    %97 = vector.load %arg4[%c0_28, %c0_29] : memref<8x64xf32, #tpu.memory_space<vmem>>, vector<8x64xf32>
    tpu.vector_store %arg4[%c0_28, %c0_29], %96 {strides = array<i32>} : memref<8x64xf32, #tpu.memory_space<vmem>>, vector<8x64xf32>,
    return
  }
}

</mosaic_0001>

<llo_original>
// kernel: tpu_custom_call.1
$region0: #{tpu_custom_call.1}
  #allocation0 [shape = 'u32[]', space=smem, size = 0x4, offset = 0x4, fixed_abs, tag = 'smem constant byte address 0x4 - core index']
  #allocation1 [shape = 'u32[72,128]{1,0:T(1,128)}', space=vmem, size = 0x9000, scoped, tag = 'internal scratch']
  %s0 = inlined_call_operand.hbm [shape: f32[64,64], index: 0, kind: input, shape index: {}]
  %s1 = inlined_call_operand.vmem [shape: f32[16,8], index: 1, kind: input, shape index: {}]
  %s2 = inlined_call_operand.vmem [shape: f32[8,16], index: 2, kind: input, shape index: {}]
  %s3 = inlined_call_operand.vmem [shape: f32[16,6], index: 3, kind: input, shape index: {}]
  %s4 = inlined_call_operand.hbm [shape: f32[8,64], index: 4, kind: output, shape index: {}]
  %s5 = sld [smem:[#allocation0]]
  $region30: #{tpu_custom_call.1} parent=0
    _
  %s7 = ssub.s32 1, %s5
  %s8 = scalar_select 0, %s7, %s5
  $region1: #{tpu_custom_call.1} parent=0
    #allocation2 [shape = 'u8[32768]{0}', space=vmem, size = 0x8000, scoped, tag = 'input window, operand 0, single buffered']
    #allocation3 [shape = 's32[1]{0}', space=sflag, size = 0x4, scoped, tag = 'scoped memory for tpu_custom_call.1']
    #allocation4 [shape = 's32[1]{0}', space=sflag, size = 0x4, scoped, tag = 'scoped memory for tpu_custom_call.1']
    #allocation5 [shape = 'u8[4096]{0}', space=vmem, size = 0x1000, scoped, tag = 'output window, operand 0, single buffered']
    %9 = vsyncpa [#allocation3], 0
    %10 = vsyncpa [#allocation4], 0
    // Predicated region
    $region2: #{tpu_custom_call.1} parent=1 // pred_check
      _
    $region3: #{tpu_custom_call.1} parent=1 // pred_check_branch
      %12 = sbr.rel (0) target = $region5
    $region4: #{tpu_custom_call.1} parent=1 // pred_region
      %14 = vsyncadd [#allocation3], 0
      %s15 = sshll.u32 %s0, 4
      %s16 = int_to_ptr.hbm [resolvable:$true] %s15
      %s17 = sshll.u32 [#allocation2], 4
      %s18 = int_to_ptr.vmem [resolvable:$true] %s17
      %23 = dma.hbm_to_vmem [thread:$0]  %s16, 1024, %s18, [#allocation3], 128, 128, 8
    $region5: #{tpu_custom_call.1} parent=1 // pred_fallthru
      _
    // Predicated region
    $region6: #{tpu_custom_call.1} parent=1 // pred_check
      _
    $region7: #{tpu_custom_call.1} parent=1 // pred_check_branch
      %25 = sbr.rel (0) target = $region9
    $region8: #{tpu_custom_call.1} parent=1 // pred_region
      _
    $region9: #{tpu_custom_call.1} parent=1 // pred_fallthru
      _
    // Predicated region
    $region10: #{tpu_custom_call.1} parent=1 // pred_check
      _
    $region11: #{tpu_custom_call.1} parent=1 // pred_check_branch
      %27 = sbr.rel (0) target = $region13
    $region12: #{tpu_custom_call.1} parent=1 // pred_region
      _
    $region13: #{tpu_custom_call.1} parent=1 // pred_fallthru
      _
    // Predicated region
    $region14: #{tpu_custom_call.1} parent=1 // pred_check
      _
    $region15: #{tpu_custom_call.1} parent=1 // pred_check_branch
      %29 = sbr.rel (0) target = $region17
    $region16: #{tpu_custom_call.1} parent=1 // pred_region
      _
    $region17: #{tpu_custom_call.1} parent=1 // pred_fallthru
      _
    // Predicated region
    $region18: #{tpu_custom_call.1} parent=1 // pred_check
      _
    $region19: #{tpu_custom_call.1} parent=1 // pred_check_branch
      %31 = sbr.rel (0) target = $region21
    $region20: #{tpu_custom_call.1} parent=1 // pred_region
      %33 = dma.done [#allocation3], 1024
    $region21: #{tpu_custom_call.1} parent=1 // pred_fallthru
      _
    %v34 = vld [vmem:[#allocation2] sm:$0xff]
    %v35 = vld [vmem:[#allocation2 + $0x8] sm:$0xff]
    %v36 = vld [vmem:[#allocation2 + $0x10] sm:$0xff]
    %v37 = vld [vmem:[#allocation2 + $0x18] sm:$0xff]
    %v38 = vld [vmem:[#allocation2 + $0x20] sm:$0xff]
    %v39 = vld [vmem:[#allocation2 + $0x28] sm:$0xff]
    %v40 = vld [vmem:[#allocation2 + $0x30] sm:$0xff]
    %v41 = vld [vmem:[#allocation2 + $0x38] sm:$0xff]
    %v42 = vand.u32 2147483647, %v34
    %v43 = vand.u32 2147483647, %v35
    %v44 = vand.u32 2147483647, %v36
    %v45 = vand.u32 2147483647, %v37
    %v46 = vand.u32 2147483647, %v38
    %v47 = vand.u32 2147483647, %v39
    %v48 = vand.u32 2147483647, %v40
    %v49 = vand.u32 2147483647, %v41
    %vm50 = vcmp.ne.f32.partialorder %v34, 0.0
    %vm51 = vcmp.ne.f32.partialorder %v35, 0.0
    %vm52 = vcmp.ne.f32.partialorder %v36, 0.0
    %vm53 = vcmp.ne.f32.partialorder %v37, 0.0
    %vm54 = vcmp.ne.f32.partialorder %v38, 0.0
    %vm55 = vcmp.ne.f32.partialorder %v39, 0.0
    %vm56 = vcmp.ne.f32.partialorder %v40, 0.0
    %vm57 = vcmp.ne.f32.partialorder %v41, 0.0
    %v58 = vsel %vm50, 1, 0
    %v59 = vsel %vm51, 1, 0
    %v60 = vsel %vm52, 1, 0
    %v61 = vsel %vm53, 1, 0
    %v62 = vsel %vm54, 1, 0
    %v63 = vsel %vm55, 1, 0
    %v64 = vsel %vm56, 1, 0
    %v65 = vsel %vm57, 1, 0
    %v66 = vcvt.s32.f32 %v58
    %v67 = vcvt.s32.f32 %v59
    %v68 = vcvt.s32.f32 %v60
    %v69 = vcvt.s32.f32 %v61
    %v70 = vcvt.s32.f32 %v62
    %v71 = vcvt.s32.f32 %v63
    %v72 = vcvt.s32.f32 %v64
    %v73 = vcvt.s32.f32 %v65
    %vm74 = vcmask 523264
    %v75 = vsel %vm74, %v66, 0.0
    %76 = vadd.xlane.f32.xlu0 %v75
    %v77 = vpop.xlane.xlu0 %76
    %v78 = vsel %vm74, %v67, 0.0
    %79 = vadd.xlane.f32.xlu0 %v78
    %v80 = vpop.xlane.xlu0 %79
    %v81 = vsel %vm74, %v68, 0.0
    %82 = vadd.xlane.f32.xlu0 %v81
    %v83 = vpop.xlane.xlu0 %82
    %v84 = vsel %vm74, %v69, 0.0
    %85 = vadd.xlane.f32.xlu0 %v84
    %v86 = vpop.xlane.xlu0 %85
    %v87 = vsel %vm74, %v70, 0.0
    %88 = vadd.xlane.f32.xlu0 %v87
    %v89 = vpop.xlane.xlu0 %88
    %v90 = vsel %vm74, %v71, 0.0
    %91 = vadd.xlane.f32.xlu0 %v90
    %v92 = vpop.xlane.xlu0 %91
    %v93 = vsel %vm74, %v72, 0.0
    %94 = vadd.xlane.f32.xlu0 %v93
    %v95 = vpop.xlane.xlu0 %94
    %v96 = vsel %vm74, %v73, 0.0
    %97 = vadd.xlane.f32.xlu0 %v96
    %v98 = vpop.xlane.xlu0 %97
    %v99 = vsel %vm74, %v42, 0.0
    %100 = vadd.xlane.f32.xlu0 %v99
    %v101 = vpop.xlane.xlu0 %100
    %v102 = vsel %vm74, %v43, 0.0
    %103 = vadd.xlane.f32.xlu0 %v102
    %v104 = vpop.xlane.xlu0 %103
    %v105 = vsel %vm74, %v44, 0.0
    %106 = vadd.xlane.f32.xlu0 %v105
    %v107 = vpop.xlane.xlu0 %106
    %v108 = vsel %vm74, %v45, 0.0
    %109 = vadd.xlane.f32.xlu0 %v108
    %v110 = vpop.xlane.xlu0 %109
    %v111 = vsel %vm74, %v46, 0.0
    %112 = vadd.xlane.f32.xlu0 %v111
    %v113 = vpop.xlane.xlu0 %112
    %v114 = vsel %vm74, %v47, 0.0
    %115 = vadd.xlane.f32.xlu0 %v114
    %v116 = vpop.xlane.xlu0 %115
    %v117 = vsel %vm74, %v48, 0.0
    %118 = vadd.xlane.f32.xlu0 %v117
    %v119 = vpop.xlane.xlu0 %118
    %v120 = vsel %vm74, %v49, 0.0
    %121 = vadd.xlane.f32.xlu0 %v120
    %v122 = vpop.xlane.xlu0 %121
    %vm123 = vcmp.gt.f32.partialorder %v77, 0.0
    %vm124 = vcmp.gt.f32.partialorder %v80, 0.0
    %vm125 = vcmp.gt.f32.partialorder %v83, 0.0
    %vm126 = vcmp.gt.f32.partialorder %v86, 0.0
    %vm127 = vcmp.gt.f32.partialorder %v89, 0.0
    %vm128 = vcmp.gt.f32.partialorder %v92, 0.0
    %vm129 = vcmp.gt.f32.partialorder %v95, 0.0
    %vm130 = vcmp.gt.f32.partialorder %v98, 0.0
    %v131 = vmax.f32 %v77, 1.0
    %v132 = vmax.f32 %v80, 1.0
    %v133 = vmax.f32 %v83, 1.0
    %v134 = vmax.f32 %v86, 1.0
    %v135 = vmax.f32 %v89, 1.0
    %v136 = vmax.f32 %v92, 1.0
    %v137 = vmax.f32 %v95, 1.0
    %v138 = vmax.f32 %v98, 1.0
    %v139 = vrcp.pop %v131
    %v140 = vmul.f32 %v131, %v139
    %v141 = vsub.f32 1.0, %v140
    %v142 = vmul.f32 %v139, %v141
    %v143 = vadd.f32 %v139, %v142
    %vm144 = vweird.f32 %v131
    %vm145 = vweird.f32 %v139
    %vm146 = vmor %vm144, %vm145
    %v147 = vsel %vm146, %v139, %v143
    %v148 = vand.u32 2147483647, %v131
    %vm149 = vcmp.eq.f32.partialorder %v148, 8.507059e+37
    %v150 = vand.u32 %v131, 2147483648
    %v151 = vor.u32 1.1754944e-38, %v150
    %v152 = vsel %vm149, %v151, %v147
    %v153 = vmul.f32 %v101, %v152
    %v154 = vrcp.pop %v132
    %v155 = vmul.f32 %v132, %v154
    %v156 = vsub.f32 1.0, %v155
    %v157 = vmul.f32 %v154, %v156
    %v158 = vadd.f32 %v154, %v157
    %vm159 = vweird.f32 %v132
    %vm160 = vweird.f32 %v154
    %vm161 = vmor %vm159, %vm160
    %v162 = vsel %vm161, %v154, %v158
    %v163 = vand.u32 2147483647, %v132
    %vm164 = vcmp.eq.f32.partialorder %v163, 8.507059e+37
    %v165 = vand.u32 %v132, 2147483648
    %v166 = vor.u32 1.1754944e-38, %v165
    %v167 = vsel %vm164, %v166, %v162
    %v168 = vmul.f32 %v104, %v167
    %v169 = vrcp.pop %v133
    %v170 = vmul.f32 %v133, %v169
    %v171 = vsub.f32 1.0, %v170
    %v172 = vmul.f32 %v169, %v171
    %v173 = vadd.f32 %v169, %v172
    %vm174 = vweird.f32 %v133
    %vm175 = vweird.f32 %v169
    %vm176 = vmor %vm174, %vm175
    %v177 = vsel %vm176, %v169, %v173
    %v178 = vand.u32 2147483647, %v133
    %vm179 = vcmp.eq.f32.partialorder %v178, 8.507059e+37
    %v180 = vand.u32 %v133, 2147483648
    %v181 = vor.u32 1.1754944e-38, %v180
    %v182 = vsel %vm179, %v181, %v177
    %v183 = vmul.f32 %v107, %v182
    %v184 = vrcp.pop %v134
    %v185 = vmul.f32 %v134, %v184
    %v186 = vsub.f32 1.0, %v185
    %v187 = vmul.f32 %v184, %v186
    %v188 = vadd.f32 %v184, %v187
    %vm189 = vweird.f32 %v134
    %vm190 = vweird.f32 %v184
    %vm191 = vmor %vm189, %vm190
    %v192 = vsel %vm191, %v184, %v188
    %v193 = vand.u32 2147483647, %v134
    %vm194 = vcmp.eq.f32.partialorder %v193, 8.507059e+37
    %v195 = vand.u32 %v134, 2147483648
    %v196 = vor.u32 1.1754944e-38, %v195
    %v197 = vsel %vm194, %v196, %v192
    %v198 = vmul.f32 %v110, %v197
    %v199 = vrcp.pop %v135
    %v200 = vmul.f32 %v135, %v199
    %v201 = vsub.f32 1.0, %v200
    %v202 = vmul.f32 %v199, %v201
    %v203 = vadd.f32 %v199, %v202
    %vm204 = vweird.f32 %v135
    %vm205 = vweird.f32 %v199
    %vm206 = vmor %vm204, %vm205
    %v207 = vsel %vm206, %v199, %v203
    %v208 = vand.u32 2147483647, %v135
    %vm209 = vcmp.eq.f32.partialorder %v208, 8.507059e+37
    %v210 = vand.u32 %v135, 2147483648
    %v211 = vor.u32 1.1754944e-38, %v210
    %v212 = vsel %vm209, %v211, %v207
    %v213 = vmul.f32 %v113, %v212
    %v214 = vrcp.pop %v136
    %v215 = vmul.f32 %v136, %v214
    %v216 = vsub.f32 1.0, %v215
    %v217 = vmul.f32 %v214, %v216
    %v218 = vadd.f32 %v214, %v217
    %vm219 = vweird.f32 %v136
    %vm220 = vweird.f32 %v214
    %vm221 = vmor %vm219, %vm220
    %v222 = vsel %vm221, %v214, %v218
    %v223 = vand.u32 2147483647, %v136
    %vm224 = vcmp.eq.f32.partialorder %v223, 8.507059e+37
    %v225 = vand.u32 %v136, 2147483648
    %v226 = vor.u32 1.1754944e-38, %v225
    %v227 = vsel %vm224, %v226, %v222
    %v228 = vmul.f32 %v116, %v227
    %v229 = vrcp.pop %v137
    %v230 = vmul.f32 %v137, %v229
    %v231 = vsub.f32 1.0, %v230
    %v232 = vmul.f32 %v229, %v231
    %v233 = vadd.f32 %v229, %v232
    %vm234 = vweird.f32 %v137
    %vm235 = vweird.f32 %v229
    %vm236 = vmor %vm234, %vm235
    %v237 = vsel %vm236, %v229, %v233
    %v238 = vand.u32 2147483647, %v137
    %vm239 = vcmp.eq.f32.partialorder %v238, 8.507059e+37
    %v240 = vand.u32 %v137, 2147483648
    %v241 = vor.u32 1.1754944e-38, %v240
    %v242 = vsel %vm239, %v241, %v237
    %v243 = vmul.f32 %v119, %v242
    %v244 = vrcp.pop %v138
    %v245 = vmul.f32 %v138, %v244
    %v246 = vsub.f32 1.0, %v245
    %v247 = vmul.f32 %v244, %v246
    %v248 = vadd.f32 %v244, %v247
    %vm249 = vweird.f32 %v138
    %vm250 = vweird.f32 %v244
    %vm251 = vmor %vm249, %vm250
    %v252 = vsel %vm251, %v244, %v248
    %v253 = vand.u32 2147483647, %v138
    %vm254 = vcmp.eq.f32.partialorder %v253, 8.507059e+37
    %v255 = vand.u32 %v138, 2147483648
    %v256 = vor.u32 1.1754944e-38, %v255
    %v257 = vsel %vm254, %v256, %v252
    %v258 = vmul.f32 %v122, %v257
    %v259 = vsel %vm123, %v153, 0.0
    %v260 = vsel %vm124, %v168, 0.0
    %v261 = vsel %vm125, %v183, 0.0
    %v262 = vsel %vm126, %v198, 0.0
    %v263 = vsel %vm127, %v213, 0.0
    %v264 = vsel %vm128, %v228, 0.0
    %v265 = vsel %vm129, %v243, 0.0
    %v266 = vsel %vm130, %v258, 0.0
    %v267 = vlaneseq
    %v268 = vshrl.u32 %v267, 7
    %v269 = vadd.s32 %v268, 8
    %v270 = vadd.s32 %v268, 16
    %v271 = vadd.s32 %v268, 24
    %v272 = vadd.s32 %v268, 32
    %v273 = vadd.s32 %v268, 40
    %v274 = vadd.s32 %v268, 48
    %v275 = vadd.s32 %v268, 56
    %v276 = vlaneseq
    %v277 = vand.u32 %v276, 127
    %vm278 = vcmp.eq.s32.totalorder %v268, %v277
    %vm279 = vcmp.eq.s32.totalorder %v269, %v277
    %vm280 = vcmp.eq.s32.totalorder %v270, %v277
    %vm281 = vcmp.eq.s32.totalorder %v271, %v277
    %vm282 = vcmp.eq.s32.totalorder %v272, %v277
    %vm283 = vcmp.eq.s32.totalorder %v273, %v277
    %vm284 = vcmp.eq.s32.totalorder %v274, %v277
    %vm285 = vcmp.eq.s32.totalorder %v275, %v277
    %v286 = vsel %vm278, %v34, 0.0
    %v287 = vsel %vm279, %v35, 0.0
    %v288 = vsel %vm280, %v36, 0.0
    %v289 = vsel %vm281, %v37, 0.0
    %v290 = vsel %vm282, %v38, 0.0
    %v291 = vsel %vm283, %v39, 0.0
    %v292 = vsel %vm284, %v40, 0.0
    %v293 = vsel %vm285, %v41, 0.0
    %v294 = vsel %vm74, %v286, 0.0
    %295 = vadd.xlane.f32.xlu0 %v294
    %v296 = vpop.xlane.xlu0 %295
    %v297 = vsel %vm74, %v287, 0.0
    %298 = vadd.xlane.f32.xlu0 %v297
    %v299 = vpop.xlane.xlu0 %298
    %v300 = vsel %vm74, %v288, 0.0
    %301 = vadd.xlane.f32.xlu0 %v300
    %v302 = vpop.xlane.xlu0 %301
    %v303 = vsel %vm74, %v289, 0.0
    %304 = vadd.xlane.f32.xlu0 %v303
    %v305 = vpop.xlane.xlu0 %304
    %v306 = vsel %vm74, %v290, 0.0
    %307 = vadd.xlane.f32.xlu0 %v306
    %v308 = vpop.xlane.xlu0 %307
    %v309 = vsel %vm74, %v291, 0.0
    %310 = vadd.xlane.f32.xlu0 %v309
    %v311 = vpop.xlane.xlu0 %310
    %v312 = vsel %vm74, %v292, 0.0
    %313 = vadd.xlane.f32.xlu0 %v312
    %v314 = vpop.xlane.xlu0 %313
    %v315 = vsel %vm74, %v293, 0.0
    %316 = vadd.xlane.f32.xlu0 %v315
    %v317 = vpop.xlane.xlu0 %316
    %v318 = vand.u32 2147483647, %v296
    %v319 = vand.u32 2147483647, %v299
    %v320 = vand.u32 2147483647, %v302
    %v321 = vand.u32 2147483647, %v305
    %v322 = vand.u32 2147483647, %v308
    %v323 = vand.u32 2147483647, %v311
    %v324 = vand.u32 2147483647, %v314
    %v325 = vand.u32 2147483647, %v317
    %v326 = vsub.f32 %v101, %v318
    %v327 = vsub.f32 %v104, %v319
    %v328 = vsub.f32 %v107, %v320
    %v329 = vsub.f32 %v110, %v321
    %v330 = vsub.f32 %v113, %v322
    %v331 = vsub.f32 %v116, %v323
    %v332 = vsub.f32 %v119, %v324
    %v333 = vsub.f32 %v122, %v325
    %v334 = vadd.f32 %v296, %v259
    %v335 = vadd.f32 %v299, %v260
    %v336 = vadd.f32 %v302, %v261
    %v337 = vadd.f32 %v305, %v262
    %v338 = vadd.f32 %v308, %v263
    %v339 = vadd.f32 %v311, %v264
    %v340 = vadd.f32 %v314, %v265
    %v341 = vadd.f32 %v317, %v266
    %v342 = vand.u32 2147483647, %v334
    %v343 = vand.u32 2147483647, %v335
    %v344 = vand.u32 2147483647, %v336
    %v345 = vand.u32 2147483647, %v337
    %v346 = vand.u32 2147483647, %v338
    %v347 = vand.u32 2147483647, %v339
    %v348 = vand.u32 2147483647, %v340
    %v349 = vand.u32 2147483647, %v341
    %v350 = vadd.f32 %v326, %v342
    %v351 = vadd.f32 %v327, %v343
    %v352 = vadd.f32 %v328, %v344
    %v353 = vadd.f32 %v329, %v345
    %v354 = vadd.f32 %v330, %v346
    %v355 = vadd.f32 %v331, %v347
    %v356 = vadd.f32 %v332, %v348
    %v357 = vadd.f32 %v333, %v349
    %vm358 = vcmp.gt.f32.partialorder %v350, 0.0
    %vm359 = vcmp.gt.f32.partialorder %v351, 0.0
    %vm360 = vcmp.gt.f32.partialorder %v352, 0.0
    %vm361 = vcmp.gt.f32.partialorder %v353, 0.0
    %vm362 = vcmp.gt.f32.partialorder %v354, 0.0
    %vm363 = vcmp.gt.f32.partialorder %v355, 0.0
    %vm364 = vcmp.gt.f32.partialorder %v356, 0.0
    %vm365 = vcmp.gt.f32.partialorder %v357, 0.0
    %v366 = vmax.f32 %v350, 1e-30
    %v367 = vmax.f32 %v351, 1e-30
    %v368 = vmax.f32 %v352, 1e-30
    %v369 = vmax.f32 %v353, 1e-30
    %v370 = vmax.f32 %v354, 1e-30
    %v371 = vmax.f32 %v355, 1e-30
    %v372 = vmax.f32 %v356, 1e-30
    %v373 = vmax.f32 %v357, 1e-30
    %v374 = vrsqrt.pop %v366
    %v375 = vmul.f32 %v374, %v366
    %v376 = vmul.f32 %v375, %v374
    %v377 = vmul.f32 0.5, %v376
    %v378 = vsub.f32 1.5, %v377
    %v379 = vmul.f32 %v374, %v378
    %vm380 = vweird.f32 %v366
    %vm381 = vweird.f32 %v374
    %vm382 = vmor %vm380, %vm381
    %v383 = vsel %vm382, %v374, %v379
    %v384 = vrsqrt.pop %v367
    %v385 = vmul.f32 %v384, %v367
    %v386 = vmul.f32 %v385, %v384
    %v387 = vmul.f32 0.5, %v386
    %v388 = vsub.f32 1.5, %v387
    %v389 = vmul.f32 %v384, %v388
    %vm390 = vweird.f32 %v367
    %vm391 = vweird.f32 %v384
    %vm392 = vmor %vm390, %vm391
    %v393 = vsel %vm392, %v384, %v389
    %v394 = vrsqrt.pop %v368
    %v395 = vmul.f32 %v394, %v368
    %v396 = vmul.f32 %v395, %v394
    %v397 = vmul.f32 0.5, %v396
    %v398 = vsub.f32 1.5, %v397
    %v399 = vmul.f32 %v394, %v398
    %vm400 = vweird.f32 %v368
    %vm401 = vweird.f32 %v394
    %vm402 = vmor %vm400, %vm401
    %v403 = vsel %vm402, %v394, %v399
    %v404 = vrsqrt.pop %v369
    %v405 = vmul.f32 %v404, %v369
    %v406 = vmul.f32 %v405, %v404
    %v407 = vmul.f32 0.5, %v406
    %v408 = vsub.f32 1.5, %v407
    %v409 = vmul.f32 %v404, %v408
    %vm410 = vweird.f32 %v369
    %vm411 = vweird.f32 %v404
    %vm412 = vmor %vm410, %vm411
    %v413 = vsel %vm412, %v404, %v409
    %v414 = vrsqrt.pop %v370
    %v415 = vmul.f32 %v414, %v370
    %v416 = vmul.f32 %v415, %v414
    %v417 = vmul.f32 0.5, %v416
    %v418 = vsub.f32 1.5, %v417
    %v419 = vmul.f32 %v414, %v418
    %vm420 = vweird.f32 %v370
    %vm421 = vweird.f32 %v414
    %vm422 = vmor %vm420, %vm421
    %v423 = vsel %vm422, %v414, %v419
    %v424 = vrsqrt.pop %v371
    %v425 = vmul.f32 %v424, %v371
    %v426 = vmul.f32 %v425, %v424
    %v427 = vmul.f32 0.5, %v426
    %v428 = vsub.f32 1.5, %v427
    %v429 = vmul.f32 %v424, %v428
    %vm430 = vweird.f32 %v371
    %vm431 = vweird.f32 %v424
    %vm432 = vmor %vm430, %vm431
    %v433 = vsel %vm432, %v424, %v429
    %v434 = vrsqrt.pop %v372
    %v435 = vmul.f32 %v434, %v372
    %v436 = vmul.f32 %v435, %v434
    %v437 = vmul.f32 0.5, %v436
    %v438 = vsub.f32 1.5, %v437
    %v439 = vmul.f32 %v434, %v438
    %vm440 = vweird.f32 %v372
    %vm441 = vweird.f32 %v434
    %vm442 = vmor %vm440, %vm441
    %v443 = vsel %vm442, %v434, %v439
    %v444 = vrsqrt.pop %v373
    %v445 = vmul.f32 %v444, %v373
    %v446 = vmul.f32 %v445, %v444
    %v447 = vmul.f32 0.5, %v446
    %v448 = vsub.f32 1.5, %v447
    %v449 = vmul.f32 %v444, %v448
    %vm450 = vweird.f32 %v373
    %vm451 = vweird.f32 %v444
    %vm452 = vmor %vm450, %vm451
    %v453 = vsel %vm452, %v444, %v449
    %v454 = vsel %vm358, %v383, 0.0
    %v455 = vsel %vm359, %v393, 0.0
    %v456 = vsel %vm360, %v403, 0.0
    %v457 = vsel %vm361, %v413, 0.0
    %v458 = vsel %vm362, %v423, 0.0
    %v459 = vsel %vm363, %v433, 0.0
    %v460 = vsel %vm364, %v443, 0.0
    %v461 = vsel %vm365, %v453, 0.0
    %v462 = vmul.f32 %v34, %v454
    %v463 = vmul.f32 %v35, %v455
    %v464 = vmul.f32 %v36, %v456
    %v465 = vmul.f32 %v37, %v457
    %v466 = vmul.f32 %v38, %v458
    %v467 = vmul.f32 %v39, %v459
    %v468 = vmul.f32 %v40, %v460
    %v469 = vmul.f32 %v41, %v461
    %470 = vxpose.xlu0.b32.start [1/16] %v454, 128
    %471 = vxpose.xlu0.b32.cont [2/16] %v455, 128
    %472 = vxpose.xlu0.b32.cont [3/16] %v456, 128
    %473 = vxpose.xlu0.b32.cont [4/16] %v457, 128
    %474 = vxpose.xlu0.b32.cont [5/16] %v458, 128
    %475 = vxpose.xlu0.b32.cont [6/16] %v459, 128
    %476 = vxpose.xlu0.b32.cont [7/16] %v460, 128
    %477 = vxpose.xlu0.b32.cont [8/16] %v461, 128
    %478 = vxpose.xlu0.b32.cont [9/16] 0.0, 128
    %479 = vxpose.xlu0.b32.cont [10/16] 0.0, 128
    %480 = vxpose.xlu0.b32.cont [11/16] 0.0, 128
    %481 = vxpose.xlu0.b32.cont [12/16] 0.0, 128
    %482 = vxpose.xlu0.b32.cont [13/16] 0.0, 128
    %483 = vxpose.xlu0.b32.cont [14/16] 0.0, 128
    %484 = vxpose.xlu0.b32.cont [15/16] 0.0, 128
    %485 = vxpose.xlu0.b32.end [16/16] 0.0, 128
    %v486 = vpop.trf.xlu0
    %v487 = vpop.trf.xlu0
    %v488 = vpop.trf.xlu0
    %v489 = vpop.trf.xlu0
    %v490 = vpop.trf.xlu0
    %v491 = vpop.trf.xlu0
    %v492 = vpop.trf.xlu0
    %v493 = vpop.trf.xlu0
    %v494 = vpop.trf.xlu0
    %v495 = vpop.trf.xlu0
    %v496 = vpop.trf.xlu0
    %v497 = vpop.trf.xlu0
    %v498 = vpop.trf.xlu0
    %v499 = vpop.trf.xlu0
    %v500 = vpop.trf.xlu0
    %v501 = vpop.trf.xlu0
    %v502 = vmul.f32 %v259, %v454
    %v503 = vmul.f32 %v260, %v455
    %v504 = vmul.f32 %v261, %v456
    %v505 = vmul.f32 %v262, %v457
    %v506 = vmul.f32 %v263, %v458
    %v507 = vmul.f32 %v264, %v459
    %v508 = vmul.f32 %v265, %v460
    %v509 = vmul.f32 %v266, %v461
    %v510 = vmul.f32 %v502, %v454
    %v511 = vmul.f32 %v503, %v455
    %v512 = vmul.f32 %v504, %v456
    %v513 = vmul.f32 %v505, %v457
    %v514 = vmul.f32 %v506, %v458
    %v515 = vmul.f32 %v507, %v459
    %v516 = vmul.f32 %v508, %v460
    %v517 = vmul.f32 %v509, %v461
    %518 = vxpose.xlu0.b32.start [1/16] %v510, 128
    %519 = vxpose.xlu0.b32.cont [2/16] %v511, 128
    %520 = vxpose.xlu0.b32.cont [3/16] %v512, 128
    %521 = vxpose.xlu0.b32.cont [4/16] %v513, 128
    %522 = vxpose.xlu0.b32.cont [5/16] %v514, 128
    %523 = vxpose.xlu0.b32.cont [6/16] %v515, 128
    %524 = vxpose.xlu0.b32.cont [7/16] %v516, 128
    %525 = vxpose.xlu0.b32.cont [8/16] %v517, 128
    %526 = vxpose.xlu0.b32.cont [9/16] 0.0, 128
    %527 = vxpose.xlu0.b32.cont [10/16] 0.0, 128
    %528 = vxpose.xlu0.b32.cont [11/16] 0.0, 128
    %529 = vxpose.xlu0.b32.cont [12/16] 0.0, 128
    %530 = vxpose.xlu0.b32.cont [13/16] 0.0, 128
    %531 = vxpose.xlu0.b32.cont [14/16] 0.0, 128
    %532 = vxpose.xlu0.b32.cont [15/16] 0.0, 128
    %533 = vxpose.xlu0.b32.end [16/16] 0.0, 128
    %v534 = vpop.trf.xlu0
    %v535 = vpop.trf.xlu0
    %v536 = vpop.trf.xlu0
    %v537 = vpop.trf.xlu0
    %v538 = vpop.trf.xlu0
    %v539 = vpop.trf.xlu0
    %v540 = vpop.trf.xlu0
    %v541 = vpop.trf.xlu0
    %v542 = vpop.trf.xlu0
    %v543 = vpop.trf.xlu0
    %v544 = vpop.trf.xlu0
    %v545 = vpop.trf.xlu0
    %v546 = vpop.trf.xlu0
    %v547 = vpop.trf.xlu0
    %v548 = vpop.trf.xlu0
    %v549 = vpop.trf.xlu0
    %v550 = vsel %vm74, %v462, 0.0
    %v551 = vsel %vm74, %v463, 0.0
    %v552 = vadd.f32 %v550, %v551
    %v553 = vsel %vm74, %v464, 0.0
    %v554 = vadd.f32 %v552, %v553
    %v555 = vsel %vm74, %v465, 0.0
    %v556 = vadd.f32 %v554, %v555
    %v557 = vsel %vm74, %v466, 0.0
    %v558 = vadd.f32 %v556, %v557
    %v559 = vsel %vm74, %v467, 0.0
    %v560 = vadd.f32 %v558, %v559
    %v561 = vsel %vm74, %v468, 0.0
    %v562 = vadd.f32 %v560, %v561
    %v563 = vsel %vm74, %v469, 0.0
    %v564 = vadd.f32 %v562, %v563
    %v565 = vrot.slane %v564, 4
    %v566 = vadd.f32 %v564, %v565
    %v567 = vrot.slane %v566, 2
    %v568 = vadd.f32 %v566, %v567
    %v569 = vrot.slane %v568, 1
    %v570 = vadd.f32 %v568, %v569
    %v571 = vmul.f32 %v486, %v570
    %v572 = vadd.f32 %v571, %v534
    %v573 = vld [vmem:[%s3] sm:$0xff]
    %v574 = vld [vmem:[%s3 + $0x8] sm:$0xff]
    %576 = vset.pattern.permute.xlu0 0
    %577 = vperm.xlu0 %576, %v573
    %v578 = vpop.permute.xlu0 %577
    %v580 = vperm.slane %v572, 0
    %v581 = vmul.f32 %v578, %v580
    %582 = vset.pattern.permute.xlu0 1
    %583 = vperm.xlu0 %582, %v573
    %v584 = vpop.permute.xlu0 %583
    %v586 = vadd.f32 %v581, %v584
    %vm587 = vcmp.ge.f32.partialorder %v586, 0.0
    %v588 = vmul.f32 %v586, 0.1
    %v589 = vsel %vm587, %v586, %v588
    %v590 = vld [vmem:[%s1] sm:$0xff]
    %v591 = vld [vmem:[%s1 + $0x8] sm:$0xff]
    %592 = vset.pattern.permute.xlu0 2
    %593 = vperm.xlu0 %592, %v573
    %v594 = vpop.permute.xlu0 %593
    %597 = vset.pattern.permute.xlu0 2
    %598 = vperm.xlu0 %597, %v574
    %v599 = vpop.permute.xlu0 %598
    %vm601 = vcmask 64512
    %v603 = vsel %vm601, %v590, 0
    %v606 = vsel %vm601, %v591, 0
    %608 = vmatpush.msra.mxu0 0.0
    %609 = vmatpush.msra.mxu0 0.0
    %610 = vmatpush.msra.mxu0 0.0
    %611 = vmatpush.msra.mxu0 0.0
    %612 = vmatpush.msra.mxu0 0.0
    %613 = vmatpush.msra.mxu0 0.0
    %614 = vmatpush.msra.mxu0 0.0
    %615 = vmatpush.msra.mxu0 0.0
    %616 = vmatpush.msra.mxu0 0.0
    %617 = vmatpush.msra.mxu0 0.0
    %618 = vmatpush.msra.mxu0 0.0
    %619 = vmatpush.msra.mxu0 0.0
    %620 = vmatpush.msra.mxu0 0.0
    %621 = vmatpush.msra.mxu0 0.0
    %622 = vmatpush.msra.mxu0 0.0
    %623 = vmatpush.msra.mxu0 %v589
    %624 = vmatmul.f32.gmra.mxu0 %v603
    %v625 = vpop.f32.mrf.mxu0
    %v626 = vadd.f32 %v594, %v625
    %627 = vmatmul.f32.gmra.mxu0 %v606
    %v628 = vpop.f32.mrf.mxu0
    %v629 = vadd.f32 %v599, %v628
    %630 = vdwg.mxu0
    %v632 = vsel %vm74, %v626, 0
    %v635 = vsel %vm74, %v629, 0
    %637 = vmatpush.msra.mxu0 0.0
    %638 = vmatpush.msra.mxu0 0.0
    %639 = vmatpush.msra.mxu0 0.0
    %640 = vmatpush.msra.mxu0 0.0
    %641 = vmatpush.msra.mxu0 0.0
    %642 = vmatpush.msra.mxu0 0.0
    %643 = vmatpush.msra.mxu0 0.0
    %644 = vmatpush.msra.mxu0 0.0
    %645 = vmatpush.msra.mxu0 %v469
    %646 = vmatpush.msra.mxu0 %v468
    %647 = vmatpush.msra.mxu0 %v467
    %648 = vmatpush.msra.mxu0 %v466
    %649 = vmatpush.msra.mxu0 %v465
    %650 = vmatpush.msra.mxu0 %v464
    %651 = vmatpush.msra.mxu0 %v463
    %652 = vmatpush.msra.mxu0 %v462
    %653 = vmatmul.f32.gmra.mxu0 %v632
    %v654 = vpop.f32.mrf.mxu0
    %v655 = vadd.f32 0.0, %v654
    %656 = vmatmul.f32.gmra.mxu0 %v635
    %v657 = vpop.f32.mrf.mxu0
    %v658 = vadd.f32 0.0, %v657
    %659 = vdwg.mxu0
    %v660 = vperm.slane %v486, 0
    %v661 = vmul.f32 %v660, %v655
    %v662 = vmul.f32 %v660, %v658
    %v663 = vperm.slane %v534, 0
    %v664 = vmul.f32 %v626, %v663
    %v665 = vmul.f32 %v629, %v663
    %v666 = vadd.f32 %v661, %v664
    %v667 = vadd.f32 %v662, %v665
    %668 = vset.pattern.permute.xlu0 3
    %669 = vperm.xlu0 %668, %v573
    %v670 = vpop.permute.xlu0 %669
    %672 = vset.pattern.permute.xlu0 3
    %673 = vperm.xlu0 %672, %v574
    %v674 = vpop.permute.xlu0 %673
    %v676 = vadd.f32 %v666, %v670
    %v677 = vadd.f32 %v667, %v674
    %vm678 = vcmp.ge.f32.partialorder %v676, 0.0
    %vm679 = vcmp.ge.f32.partialorder %v677, 0.0
    %v680 = vmul.f32 %v676, 0.1
    %v681 = vmul.f32 %v677, 0.1
    %v682 = vsel %vm678, %v676, %v680
    %v683 = vsel %vm679, %v677, %v681
    %v684 = vld [vmem:[%s2] sm:$0xff]
    %685 = vset.pattern.permute.xlu0 4
    %686 = vperm.xlu0 %685, %v573
    %v687 = vpop.permute.xlu0 %686
    %vm689 = vcmask 130048
    %v691 = vsel %vm689, %v684, 0
    %693 = vmatpush.msra.mxu0 0.0
    %694 = vmatpush.msra.mxu0 0.0
    %695 = vmatpush.msra.mxu0 0.0
    %696 = vmatpush.msra.mxu0 0.0
    %697 = vmatpush.msra.mxu0 0.0
    %698 = vmatpush.msra.mxu0 0.0
    %699 = vmatpush.msra.mxu0 0.0
    %700 = vmatpush.msra.mxu0 0.0
    %701 = vmatpush.msra.mxu0 0.0
    %702 = vmatpush.msra.mxu0 0.0
    %703 = vmatpush.msra.mxu0 0.0
    %704 = vmatpush.msra.mxu0 0.0
    %705 = vmatpush.msra.mxu0 0.0
    %706 = vmatpush.msra.mxu0 0.0
    %707 = vmatpush.msra.mxu0 %v683
    %708 = vmatpush.msra.mxu0 %v682
    %709 = vmatmul.f32.gmra.mxu0 %v691
    %v710 = vpop.f32.mrf.mxu0
    %v711 = vadd.f32 %v687, %v710
    %712 = vdwg.mxu0
    %v714 = vsel %vm74, %v711, 0
    %716 = vmatpush.msra.mxu0 0.0
    %717 = vmatpush.msra.mxu0 0.0
    %718 = vmatpush.msra.mxu0 0.0
    %719 = vmatpush.msra.mxu0 0.0
    %720 = vmatpush.msra.mxu0 0.0
    %721 = vmatpush.msra.mxu0 0.0
    %722 = vmatpush.msra.mxu0 0.0
    %723 = vmatpush.msra.mxu0 0.0
    %724 = vmatpush.msra.mxu0 %v469
    %725 = vmatpush.msra.mxu0 %v468
    %726 = vmatpush.msra.mxu0 %v467
    %727 = vmatpush.msra.mxu0 %v466
    %728 = vmatpush.msra.mxu0 %v465
    %729 = vmatpush.msra.mxu0 %v464
    %730 = vmatpush.msra.mxu0 %v463
    %731 = vmatpush.msra.mxu0 %v462
    %732 = vmatmul.f32.gmra.mxu0 %v714
    %v733 = vpop.f32.mrf.mxu0
    %v734 = vadd.f32 0.0, %v733
    %735 = vdwg.mxu0
    %v736 = vmul.f32 %v660, %v734
    %v737 = vmul.f32 %v711, %v663
    %v738 = vadd.f32 %v736, %v737
    %739 = vset.pattern.permute.xlu0 5
    %740 = vperm.xlu0 %739, %v573
    %v741 = vpop.permute.xlu0 %740
    %v743 = vadd.f32 %v738, %v741
    %vm744 = vcmp.ge.f32.partialorder %v743, 0.0
    %v745 = vmul.f32 %v743, 0.1
    %v746 = vsel %vm744, %v743, %v745
    %747 = vst.msk [vmem:[#allocation5] sm:$0xff] %vm74, %v746
    // Predicated region
    $region22: #{tpu_custom_call.1} parent=1 // pred_check
      _
    $region23: #{tpu_custom_call.1} parent=1 // pred_check_branch
      %749 = sbr.rel (0) target = $region25
    $region24: #{tpu_custom_call.1} parent=1 // pred_region
      %751 = vsyncadd [#allocation4], 0
      %s753 = sshll.u32 [#allocation5], 4
      %s754 = int_to_ptr.vmem [resolvable:$true] %s753
      %s755 = sshll.u32 %s4, 4
      %s756 = int_to_ptr.hbm [resolvable:$true] %s755
      %758 = dma.vmem_to_hbm [thread:$0]  %s754, 128, %s756, [#allocation4]
    $region25: #{tpu_custom_call.1} parent=1 // pred_fallthru
      _
    // Predicated region
    $region26: #{tpu_custom_call.1} parent=1 // pred_check
      _
    $region27: #{tpu_custom_call.1} parent=1 // pred_check_branch
      %760 = sbr.rel (0) target = $region29
    $region28: #{tpu_custom_call.1} parent=1 // pred_region
      %762 = dma.done [#allocation4], 128
    $region29: #{tpu_custom_call.1} parent=1 // pred_fallthru
      _
    %763 = vsyncpa [#allocation3], 1
    %764 = vsyncpa [#allocation4], 1

</llo_original>
